<compile_context>
chip_gen: v7x
topology: tpu7x:2x2x1
jax: 0.10.0
libtpu: 0.0.40
codegen_flags: <defaults>
</compile_context>

<pallas_src>
import math
import numpy as np

import jax
import jax.numpy as jnp
from jax.experimental import pallas as pl
from jax.experimental.pallas import tpu as pltpu


# ----------------------------------------------------------------------------
# Pallas kernel: out = where(mask, stamp, x) on one (plane_tile, RB, CB) block
# of the (N*C, H, W) view. stamp/mask are (1, RB, CB) planes that broadcast
# over the plane tile (every (n, c) image gets the identical stamp).
# ----------------------------------------------------------------------------
def stamp_kernel(x_ref, stamp_ref, mask_ref, o_ref):
    sel = mask_ref[...] != 0                       # (1, RB, CB) int32 -> bool
    o_ref[...] = jnp.where(sel, stamp_ref[...], x_ref[...])


def _band(lo, hi, extent, align):
    """Single `align`-aligned block [idx*size, idx*size + size) covering [lo, hi).

    Returns (block_size, block_index).  Falls back to the full extent (always
    a legal block shape, divisibility-exempt) when one aligned block cannot
    cover the window.  A block that extends past `extent` is a normal partial
    edge block: reads are padded and writebacks are masked, so neighbouring
    pixels of the aliased output are never clobbered.
    """
    if extent <= align:
        return extent, 0
    size = align * ((hi - lo + align - 1) // align)
    while True:
        if size >= extent:
            return extent, 0
        start = (lo // size) * size
        if start + size >= hi:
            return size, lo // size
        size += align


def _pick_plane_tile(n_planes, band_bytes, cap_bytes=2 * 1024 * 1024):
    """Largest divisor of n_planes whose x block stays under ~2 MiB.

    Mem-bound kernels want the biggest block that fits; ~2 MiB blocks give a
    double-buffered in+out working set of ~8 MiB, comfortably under v5e's
    16 MiB default scoped VMEM (v6e/v7x: 32 MiB scoped).  No forced multi-way
    split: on v5e/v6e the grid is a serial loop, and on v7x a multi-step grid
    (hence 2-TC parallelism) appears automatically once the job is large
    enough to exceed the cap.
    """
    max_planes = max(1, cap_bytes // max(1, band_bytes))
    t = min(n_planes, max_planes)
    while n_planes % t != 0:                        # no padded edge blocks on the plane axis
        t -= 1
    return t


def apply_stamp(x, stamp_plane, mask_plane):
    """Apply the stamp to x.

    x:           jax array, shape (..., H, W)  (NCHW in the PyTorch module).
    stamp_plane: numpy (H, W) float -- full-resolution stamp values.
    mask_plane:  numpy (H, W) bool  -- True where the stamp overwrites x.
    """
    stamp_plane = np.asarray(stamp_plane)
    mask_plane = np.asarray(mask_plane)
    if not np.any(mask_plane):
        return x                                    # degenerate config: nothing to do

    *lead, H, W = x.shape
    R = int(np.prod(lead, dtype=np.int64)) if lead else 1
    itemsize = np.dtype(x.dtype).itemsize
    sub = max(8, 32 // itemsize)                    # sublane multiple for this dtype

    # Static tight bounding box of the stamp in image space.
    rows = np.nonzero(mask_plane.any(axis=1))[0]
    cols = np.nonzero(mask_plane.any(axis=0))[0]
    h_lo, h_hi = int(rows[0]), int(rows[-1]) + 1
    w_lo, w_hi = int(cols[0]), int(cols[-1]) + 1

    # One sublane-aligned row band and one lane-aligned column band per image.
    RB, rb_idx = _band(h_lo, h_hi, H, sub)
    CB, cb_idx = _band(w_lo, w_hi, W, 128)

    band_bytes = RB * CB * itemsize
    p_tile = _pick_plane_tile(R, band_bytes)
    n_steps = R // p_tile

    x3 = x.reshape(R, H, W)
    stamp3 = jnp.asarray(stamp_plane.reshape(1, H, W), dtype=x.dtype)
    mask3 = jnp.asarray(mask_plane.reshape(1, H, W).astype(np.int32))

    cost = pl.CostEstimate(
        flops=0, transcendentals=0,
        bytes_accessed=int(2 * R * band_bytes + RB * CB * (itemsize + 4)))

    out3 = pl.pallas_call(
        stamp_kernel,
        out_shape=jax.ShapeDtypeStruct((R, H, W), x.dtype),
        grid=(n_steps,),
        in_specs=[
            pl.BlockSpec((p_tile, RB, CB), lambda i: (i, rb_idx, cb_idx)),
            # Constant block index -> stamp/mask are DMA'd once and stay
            # resident in VMEM for the whole grid.
            pl.BlockSpec((1, RB, CB), lambda i: (0, rb_idx, cb_idx)),
            pl.BlockSpec((1, RB, CB), lambda i: (0, rb_idx, cb_idx)),
        ],
        out_specs=pl.BlockSpec((p_tile, RB, CB), lambda i: (i, rb_idx, cb_idx)),
        # x is aliased with the output: grid blocks never visited keep their
        # original contents, so only the stamped window moves HBM<->VMEM.
        # (If the caller does not donate x, XLA inserts a defensive copy --
        # still correct, just slower; main() donates.)
        input_output_aliases={0: 0},
        compiler_params=pltpu.CompilerParams(
            dimension_semantics=("parallel",)),
        cost_estimate=cost,
    )(x3, stamp3, mask3)
    return out3.reshape(x.shape)


# ----------------------------------------------------------------------------
# Glue: reproduce BasicStamp.__init__ / forward index arithmetic to build a
# full-resolution (H, W) stamp plane and bool write-mask (static numpy).
# ----------------------------------------------------------------------------
def make_stamp_plan(H, W, n_malicious=0, dba=False, row_shift=0, col_shift=0,
                    row_size=4, col_size=4, row_gap=0, col_gap=0, user_id=-1):
    """All of the module's indexing quirks (axis choice of the non-dba
    placement, image-space slicing of the stamp and the row/col assert in the
    dba helper) are reproduced verbatim so semantics match exactly."""
    if dba:
        assert n_malicious > 1, "dba requested but n_malicious <= 1"
        root = math.isqrt(n_malicious)
        if root ** 2 == n_malicious:
            user_rows, user_cols = root, root
        elif root * (root + 1) == n_malicious:
            user_rows, user_cols = root, root + 1
        else:
            raise ValueError(f"n_malicious={n_malicious} is not easily grid divisible")
    else:
        assert row_gap + col_gap == 0, "gap specified but attack is not distributed"
        user_rows, user_cols = 1, 1

    # "plus"-shaped stamp pattern, exactly as in the module's __init__
    stamp = np.zeros((user_rows * row_size, user_cols * col_size), np.float32)
    i, j = stamp.shape
    i, j = i // 4, j // 4
    stamp[i:3 * i, :] = 1.0
    stamp[:, j:3 * j] = 1.0

    row_move, col_move = row_size + row_gap, col_size + col_gap
    input_row_starts = row_move * np.arange(user_rows) + row_shift
    input_col_starts = col_move * np.arange(user_cols) + col_shift

    stamp_plane = np.zeros((H, W), np.float32)
    mask_plane = np.zeros((H, W), np.bool_)

    def _helper(uid):
        row, col = uid // user_cols, uid % user_cols
        irs, ics = int(input_row_starts[row]), int(input_col_starts[col])
        ire, ice = irs + row_size, ics + col_size
        # NB: the module checks row-end against x.size(-1) (=W) and col-end
        # against x.size(-2) (=H); reproduced verbatim.
        assert ire <= W and ice <= H
        # NB: the module slices the stamp with *image-space* offsets (shift and
        # gap included), not stamp-local offsets; reproduced verbatim.
        to_stamp = stamp[irs:ire, ics:ice]
        stamp_plane[irs:ire, ics:ice] = to_stamp
        mask_plane[irs:ire, ics:ice] = True

    if not dba:
        # NB: the module indexes dim -2 with col_shift/col_stop and dim -1 with
        # row_shift/row_stop; reproduced verbatim.
        col_stop, row_stop = col_shift + col_size, row_shift + row_size
        stamp_plane[col_shift:col_stop, row_shift:row_stop] = stamp
        mask_plane[col_shift:col_stop, row_shift:row_stop] = True
    elif user_id == -1:
        for u in range(n_malicious):
            _helper(u)
    else:
        _helper(user_id)

    return stamp_plane, mask_plane


def reference_forward(x_np, stamp_plane, mask_plane):
    out = x_np.copy()
    out[..., mask_plane] = stamp_plane[mask_plane]
    return out


if __name__ == "__main__":
    # Test 1: default BasicStamp config (4x4 plus-shaped stamp at the corner).
    key = jax.random.PRNGKey(0)
    N, C, H, W = 2, 4, 16, 16
    x = jax.random.normal(key, (N, C, H, W), dtype=jnp.float32)
    x_np = np.asarray(x)                     # snapshot BEFORE donating x
    stamp_plane, mask_plane = make_stamp_plan(H, W)
    fwd = jax.jit(lambda img: apply_stamp(img, stamp_plane, mask_plane),
                  donate_argnums=0)
    out = jax.block_until_ready(fwd(x))
    ref = reference_forward(x_np, stamp_plane, mask_plane)
    np.testing.assert_allclose(np.asarray(out), ref, rtol=0, atol=0)

    # Test 2: wide image (W > 128 and not a multiple of 128), stamp near the
    # bottom-right corner -> exercises the partial 128-aligned edge column
    # block on the aliased output (neighbouring pixels must stay untouched).
    N2, C2, H2, W2 = 2, 3, 40, 200
    x2 = jax.random.normal(jax.random.PRNGKey(1), (N2, C2, H2, W2), dtype=jnp.float32)
    x2_np = np.asarray(x2)
    sp2, mp2 = make_stamp_plan(H2, W2, row_shift=190, col_shift=34)
    fwd2 = jax.jit(lambda img: apply_stamp(img, sp2, mp2), donate_argnums=0)
    out2 = jax.block_until_ready(fwd2(x2))
    ref2 = reference_forward(x2_np, sp2, mp2)
    np.testing.assert_allclose(np.asarray(out2), ref2, rtol=0, atol=0)

    # Test 3: distributed backdoor (dba) over 4 users, all applied (user_id=-1).
    N3, C3, H3, W3 = 2, 2, 16, 16
    x3 = jax.random.normal(jax.random.PRNGKey(2), (N3, C3, H3, W3), dtype=jnp.float32)
    x3_np = np.asarray(x3)
    sp3, mp3 = make_stamp_plan(H3, W3, n_malicious=4, dba=True)
    fwd3 = jax.jit(lambda img: apply_stamp(img, sp3, mp3), donate_argnums=0)
    out3 = jax.block_until_ready(fwd3(x3))
    ref3 = reference_forward(x3_np, sp3, mp3)
    np.testing.assert_allclose(np.asarray(out3), ref3, rtol=0, atol=0)

    print("KERNEL_OK")
</pallas_src>

<mosaic_0001>
module attributes {stable_mosaic.version = 11 : i64} {
  func.func @stamp_kernel(%arg0: i32, %arg1: memref<8x8x16xf32, #tpu.memory_space<vmem>>, %arg2: memref<1x8x16xf32, #tpu.memory_space<vmem>>, %arg3: memref<1x8x16xi32, #tpu.memory_space<vmem>>, %arg4: memref<8x8x16xf32, #tpu.memory_space<vmem>>) attributes {dimension_semantics = [#tpu.dimension_semantics<parallel>], iteration_bounds = array<i64: 1>, scalar_prefetch = 0 : i64, scratch_operands = 0 : i64, tpu.core_type = #tpu.core_type<tc>, window_params = [{transform_indices = @transform_0, window_bounds = array<i64: 8, 8, 16>}, {transform_indices = @transform_1, window_bounds = array<i64: 1, 8, 16>}, {transform_indices = @transform_2, window_bounds = array<i64: 1, 8, 16>}, {transform_indices = @transform_3, window_bounds = array<i64: 8, 8, 16>}]} {
    %c0 = arith.constant 0 : index
    %c0_0 = arith.constant 0 : index
    %c0_1 = arith.constant 0 : index
    %0 = vector.load %arg3[%c0, %c0_0, %c0_1] : memref<1x8x16xi32, #tpu.memory_space<vmem>>, vector<1x8x16xi32>
    %c0_i32 = arith.constant 0 : i32
    %1 = vector.broadcast %c0_i32 : i32 to vector<1x8x16xi32>
    %2 = arith.cmpi ne, %0, %1 : vector<1x8x16xi32>
    %c0_2 = arith.constant 0 : index
    %c0_3 = arith.constant 0 : index
    %c0_4 = arith.constant 0 : index
    %3 = vector.load %arg2[%c0_2, %c0_3, %c0_4] : memref<1x8x16xf32, #tpu.memory_space<vmem>>, vector<1x8x16xf32>
    %c0_5 = arith.constant 0 : index
    %c0_6 = arith.constant 0 : index
    %c0_7 = arith.constant 0 : index
    %4 = vector.load %arg1[%c0_5, %c0_6, %c0_7] : memref<8x8x16xf32, #tpu.memory_space<vmem>>, vector<8x8x16xf32>
    %5 = vector.shape_cast %2 : vector<1x8x16xi1> to vector<1x8x16xi1>
    %6 = vector.broadcast %5 : vector<1x8x16xi1> to vector<8x8x16xi1>
    %7 = vector.shape_cast %3 : vector<1x8x16xf32> to vector<1x8x16xf32>
    %8 = vector.broadcast %7 : vector<1x8x16xf32> to vector<8x8x16xf32>
    %9 = arith.select %6, %8, %4 : vector<8x8x16xi1>, vector<8x8x16xf32>
    %c0_8 = arith.constant 0 : index
    %c0_9 = arith.constant 0 : index
    %c0_10 = arith.constant 0 : index
    %10 = vector.load %arg4[%c0_8, %c0_9, %c0_10] : memref<8x8x16xf32, #tpu.memory_space<vmem>>, vector<8x8x16xf32>
    tpu.vector_store %arg4[%c0_8, %c0_9, %c0_10], %9 {strides = array<i32>} : memref<8x8x16xf32, #tpu.memory_space<vmem>>, vector<8x8x16xf32>,
    return
  }
  func.func @transform_0(%arg0: i32) -> (i32, i32, i32) {
    %c0_i32 = arith.constant 0 : i32
    %c0_i32_0 = arith.constant 0 : i32
    %c0_i32_1 = arith.constant 0 : i32
    return %arg0, %c0_i32, %c0_i32_0 : i32, i32, i32
  }
  func.func @transform_1(%arg0: i32) -> (i32, i32, i32) {
    %c0_i32 = arith.constant 0 : i32
    %c0_i32_0 = arith.constant 0 : i32
    %c0_i32_1 = arith.constant 0 : i32
    %c0_i32_2 = arith.constant 0 : i32
    return %c0_i32, %c0_i32_0, %c0_i32_1 : i32, i32, i32
  }
  func.func @transform_2(%arg0: i32) -> (i32, i32, i32) {
    %c0_i32 = arith.constant 0 : i32
    %c0_i32_0 = arith.constant 0 : i32
    %c0_i32_1 = arith.constant 0 : i32
    %c0_i32_2 = arith.constant 0 : i32
    return %c0_i32, %c0_i32_0, %c0_i32_1 : i32, i32, i32
  }
  func.func @transform_3(%arg0: i32) -> (i32, i32, i32) {
    %c0_i32 = arith.constant 0 : i32
    %c0_i32_0 = arith.constant 0 : i32
    %c0_i32_1 = arith.constant 0 : i32
    return %arg0, %c0_i32, %c0_i32_0 : i32, i32, i32
  }
}

</mosaic_0001>

<llo_original>
// kernel: _lambda_.1
$region0: #{_lambda_.1}
  #allocation0 [shape = 'u32[]', space=smem, size = 0x4, offset = 0x4, fixed_abs, tag = 'smem constant byte address 0x4 - core index']
  #allocation1 [shape = 'u32[144,128]{1,0:T(1,128)}', space=vmem, size = 0x12000, scoped, tag = 'internal scratch']
  %s0 = inlined_call_operand.hbm [shape: f32[8,16,16], index: 0, kind: input, shape index: {}, may-alias: {0,3}]
  %s1 = inlined_call_operand.hbm [shape: f32[1,16,16], index: 1, kind: input, shape index: {}]
  %s2 = inlined_call_operand.hbm [shape: s32[1,16,16], index: 2, kind: input, shape index: {}]
  %s3 = inlined_call_operand.hbm [shape: f32[8,16,16], index: 3, kind: output, shape index: {}, may-alias: {0,3}]
  %s4 = sld [smem:[#allocation0]]
  $region34: #{_lambda_.1} parent=0
    _
  %s6 = ssub.s32 1, %s4
  %s7 = scalar_select 0, %s6, %s4
  $region1: #{_lambda_.1} parent=0
    #allocation2 [shape = 'u8[32768]{0}', space=vmem, size = 0x8000, scoped, tag = 'input window, operand 0, single buffered']
    #allocation3 [shape = 's32[1]{0}', space=sflag, size = 0x4, scoped, tag = 'scoped memory for _lambda_.1']
    #allocation4 [shape = 's32[1]{0}', space=sflag, size = 0x4, scoped, tag = 'scoped memory for _lambda_.1']
    #allocation5 [shape = 'u8[4096]{0}', space=vmem, size = 0x1000, scoped, tag = 'input window, operand 1, single buffered']
    #allocation6 [shape = 's32[1]{0}', space=sflag, size = 0x4, scoped, tag = 'scoped memory for _lambda_.1']
    #allocation7 [shape = 'u8[4096]{0}', space=vmem, size = 0x1000, scoped, tag = 'input window, operand 2, single buffered']
    #allocation8 [shape = 'u8[32768]{0}', space=vmem, size = 0x8000, scoped, tag = 'output window, operand 0, single buffered']
    %8 = vsyncpa [#allocation3], 0
    %9 = vsyncpa [#allocation6], 0
    %10 = vsyncpa [#allocation4], 0
    // Predicated region
    $region2: #{_lambda_.1} parent=1 // pred_check
      _
    $region3: #{_lambda_.1} parent=1 // pred_check_branch
      %12 = sbr.rel (0) target = $region5
    $region4: #{_lambda_.1} parent=1 // pred_region
      %s14 = ssub.s32 1024, 1024
      %15 = vsyncadd [#allocation3], %s14
      %s16 = sshll.u32 [#allocation2], 4
      %s17 = int_to_ptr.vmem [resolvable:$true] %s16
      %22 = dma.hbm_to_vmem [thread:$0]  %s0, 1024, %s17, [#allocation3], 256, 128, 8
    $region5: #{_lambda_.1} parent=1 // pred_fallthru
      _
    // Predicated region
    $region6: #{_lambda_.1} parent=1 // pred_check
      _
    $region7: #{_lambda_.1} parent=1 // pred_check_branch
      %24 = sbr.rel (0) target = $region9
    $region8: #{_lambda_.1} parent=1 // pred_region
      %s26 = ssub.s32 128, 128
      %27 = vsyncadd [#allocation6], %s26
      %s29 = sshll.u32 [#allocation5], 4
      %s30 = int_to_ptr.vmem [resolvable:$true] %s29
      %32 = dma.hbm_to_vmem [thread:$0]  %s1, 128, %s30, [#allocation6]
    $region9: #{_lambda_.1} parent=1 // pred_fallthru
      _
    // Predicated region
    $region10: #{_lambda_.1} parent=1 // pred_check
      _
    $region11: #{_lambda_.1} parent=1 // pred_check_branch
      %34 = sbr.rel (0) target = $region13
    $region12: #{_lambda_.1} parent=1 // pred_region
      %s36 = ssub.s32 128, 128
      %37 = vsyncadd [#allocation6], %s36
      %s39 = sshll.u32 [#allocation7], 4
      %s40 = int_to_ptr.vmem [resolvable:$true] %s39
      %42 = dma.hbm_to_vmem [thread:$0]  %s2, 128, %s40, [#allocation6]
    $region13: #{_lambda_.1} parent=1 // pred_fallthru
      _
    // Predicated region
    $region14: #{_lambda_.1} parent=1 // pred_check
      _
    $region15: #{_lambda_.1} parent=1 // pred_check_branch
      %44 = sbr.rel (0) target = $region17
    $region16: #{_lambda_.1} parent=1 // pred_region
      %45 = dma.done [#allocation3], 1024
    $region17: #{_lambda_.1} parent=1 // pred_fallthru
      _
    // Predicated region
    $region18: #{_lambda_.1} parent=1 // pred_check
      _
    $region19: #{_lambda_.1} parent=1 // pred_check_branch
      %47 = sbr.rel (0) target = $region21
    $region20: #{_lambda_.1} parent=1 // pred_region
      %48 = dma.done [#allocation6], 128
    $region21: #{_lambda_.1} parent=1 // pred_fallthru
      _
    // Predicated region
    $region22: #{_lambda_.1} parent=1 // pred_check
      _
    $region23: #{_lambda_.1} parent=1 // pred_check_branch
      %50 = sbr.rel (0) target = $region25
    $region24: #{_lambda_.1} parent=1 // pred_region
      %51 = dma.done [#allocation6], 128
    $region25: #{_lambda_.1} parent=1 // pred_fallthru
      _
    %v52 = vld [vmem:[#allocation7] sm:$0xff]
    %vm53 = vcmp.ne.s32.totalorder %v52, 0
    %v54 = vld [vmem:[#allocation5] sm:$0xff]
    %v55 = vld [vmem:[#allocation2] sm:$0xff]
    %v56 = vld [vmem:[#allocation2 + $0x8] sm:$0xff]
    %v57 = vld [vmem:[#allocation2 + $0x10] sm:$0xff]
    %v58 = vld [vmem:[#allocation2 + $0x18] sm:$0xff]
    %v59 = vld [vmem:[#allocation2 + $0x20] sm:$0xff]
    %v60 = vld [vmem:[#allocation2 + $0x28] sm:$0xff]
    %v61 = vld [vmem:[#allocation2 + $0x30] sm:$0xff]
    %v62 = vld [vmem:[#allocation2 + $0x38] sm:$0xff]
    %v63 = vsel %vm53, 1, 0
    %vm64 = vcmp.eq.s32.totalorder %v63, 1
    %v65 = vsel %vm64, %v54, %v55
    %v66 = vsel %vm64, %v54, %v56
    %v67 = vsel %vm64, %v54, %v57
    %v68 = vsel %vm64, %v54, %v58
    %v69 = vsel %vm64, %v54, %v59
    %v70 = vsel %vm64, %v54, %v60
    %v71 = vsel %vm64, %v54, %v61
    %v72 = vsel %vm64, %v54, %v62
    %vm73 = vcmask 130048
    %74 = vst.msk [vmem:[#allocation8] sm:$0xff] %vm73, %v65
    %75 = vst.msk [vmem:[#allocation8 + $0x8] sm:$0xff] %vm73, %v66
    %76 = vst.msk [vmem:[#allocation8 + $0x10] sm:$0xff] %vm73, %v67
    %77 = vst.msk [vmem:[#allocation8 + $0x18] sm:$0xff] %vm73, %v68
    %78 = vst.msk [vmem:[#allocation8 + $0x20] sm:$0xff] %vm73, %v69
    %79 = vst.msk [vmem:[#allocation8 + $0x28] sm:$0xff] %vm73, %v70
    %80 = vst.msk [vmem:[#allocation8 + $0x30] sm:$0xff] %vm73, %v71
    %81 = vst.msk [vmem:[#allocation8 + $0x38] sm:$0xff] %vm73, %v72
    // Predicated region
    $region26: #{_lambda_.1} parent=1 // pred_check
      _
    $region27: #{_lambda_.1} parent=1 // pred_check_branch
      %83 = sbr.rel (0) target = $region29
    $region28: #{_lambda_.1} parent=1 // pred_region
      %s85 = ssub.s32 1024, 1024
      %86 = vsyncadd [#allocation4], %s85
      %s87 = sshll.u32 [#allocation8], 4
      %s88 = int_to_ptr.vmem [resolvable:$true] %s87
      %93 = dma.vmem_to_hbm [thread:$0]  %s88, 1024, %s3, [#allocation4], 128, 256, 8
    $region29: #{_lambda_.1} parent=1 // pred_fallthru
      _
    // Predicated region
    $region30: #{_lambda_.1} parent=1 // pred_check
      _
    $region31: #{_lambda_.1} parent=1 // pred_check_branch
      %95 = sbr.rel (0) target = $region33
    $region32: #{_lambda_.1} parent=1 // pred_region
      %96 = dma.done [#allocation4], 1024
    $region33: #{_lambda_.1} parent=1 // pred_fallthru
      _
    %97 = vsyncpa [#allocation3], 1
    %98 = vsyncpa [#allocation6], 1
    %99 = vsyncpa [#allocation4], 1

</llo_original>
